<compile_context>
chip_gen: v5e
topology: v5e:2x2
jax: 0.10.0
libtpu: 0.0.40
codegen_flags: <defaults>
</compile_context>

<pallas_src>
import math
import functools

import jax
import jax.numpy as jnp
import numpy as np
from jax.experimental import pallas as pl
from jax.experimental.pallas import tpu as pltpu


def _mha_kernel(q_ref, mask_ref, wqkv_ref, bqkv_ref, wo_ref, bo_ref, o_ref,
                *, n_heads, dim_per_head):
    D = n_heads * dim_per_head
    L = q_ref.shape[1]

    x = q_ref[0]                  # (L, D)  float32
    mask = mask_ref[0]            # (1, Lk) float32, 0.0 == masked out

    # ---- fused QKV projection: one MXU contraction, bf16 inputs / f32 acc.
    qkv = jnp.dot(x.astype(jnp.bfloat16), wqkv_ref[...],
                  preferred_element_type=jnp.float32) + bqkv_ref[...]    # (L, 3D)

    inv_scale = jnp.float32(1.0 / math.sqrt(dim_per_head))
    q = qkv[:, :D] * inv_scale    # fold 1/sqrt(dh) into q once (L*D muls)
    k = qkv[:, D:2 * D]
    v = qkv[:, 2 * D:]

    # (L, D) -> (H, L, dh): batched head axis for full-width contractions.
    def to_heads(t):
        return jnp.transpose(t.reshape(L, n_heads, dim_per_head), (1, 0, 2))

    qh = to_heads(q).astype(jnp.bfloat16)
    kh = to_heads(k).astype(jnp.bfloat16)
    vh = to_heads(v).astype(jnp.bfloat16)

    # Scores for all heads in one batched contraction (no explicit k.T).
    scores = jnp.einsum('hqd,hkd->hqk', qh, kh,
                        preferred_element_type=jnp.float32)              # (H, L, Lk)

    # Additive mask bias computed once; matches masked_fill_(mask==0, -1e20)
    # followed by the 1/sqrt(dh) scaling (still effectively -inf).
    neg_bias = jnp.where(mask == 0.0, jnp.float32(-1e20), jnp.float32(0.0))
    scores = scores + neg_bias.reshape(1, 1, -1)

    # Softmax over the key axis (f32); reciprocal goes to the EUP slot.
    m = jnp.max(scores, axis=-1, keepdims=True)
    e = jnp.exp(scores - m)
    s = jnp.sum(e, axis=-1, keepdims=True)
    probs = e * pl.reciprocal(s, approx=True)

    # TODO(synk): dropout on attn weights omitted (p=0 / inference mode).

    ctx = jnp.einsum('hqk,hkd->hqd', probs.astype(jnp.bfloat16), vh,
                     preferred_element_type=jnp.float32)                 # (H, L, dh)
    ctx = jnp.transpose(ctx, (1, 0, 2)).reshape(L, D)                    # (L, D)

    out = jnp.dot(ctx.astype(jnp.bfloat16), wo_ref[...],
                  preferred_element_type=jnp.float32) + bo_ref[...]
    o_ref[0] = out.astype(o_ref.dtype)


def multi_head_attention(query, mask, params, n_heads):
    """query: (B, L, D) float32; mask: (B, L) float32 (0 => masked)."""
    B, L, D = query.shape
    assert D % n_heads == 0
    dh = D // n_heads

    wq_t, bq, wk_t, bk, wv_t, bv, wo_t, bo = params
    # Fuse the three projection weights into one (D, 3D) bf16 slab; biases f32.
    w_qkv = jnp.concatenate([wq_t, wk_t, wv_t], axis=1).astype(jnp.bfloat16)
    b_qkv = jnp.concatenate([bq, bk, bv], axis=1).astype(jnp.float32)
    wo = wo_t.astype(jnp.bfloat16)
    bo = bo.astype(jnp.float32)

    mask3 = mask.reshape(B, 1, L).astype(jnp.float32)

    kernel = functools.partial(_mha_kernel, n_heads=n_heads, dim_per_head=dh)

    full = lambda b: (0, 0)
    per_b = lambda b: (b, 0, 0)

    # TODO(synk): for production L/D, tile the sequence flash-style (online
    # softmax, (1, TQ, D)/(1, TK, D) blocks), pad D to a multiple of 128 for
    # lane-dense stores, and single-buffer the grid-invariant weight blocks.
    return pl.pallas_call(
        kernel,
        out_shape=jax.ShapeDtypeStruct((B, L, D), jnp.float32),
        grid_spec=pltpu.PrefetchScalarGridSpec(
            num_scalar_prefetch=0,
            grid=(B,),
            in_specs=[
                pl.BlockSpec((1, L, D), per_b),        # query
                pl.BlockSpec((1, 1, L), per_b),        # mask
                pl.BlockSpec((D, 3 * D), full),        # fused Wqkv^T (bf16)
                pl.BlockSpec((1, 3 * D), full),        # fused qkv bias (f32)
                pl.BlockSpec((D, D), full),            # Wo^T (bf16)
                pl.BlockSpec((1, D), full),            # bo (f32)
            ],
            out_specs=pl.BlockSpec((1, L, D), per_b),
        ),
        compiler_params=pltpu.CompilerParams(
            dimension_semantics=("parallel",)),
    )(query, mask3, w_qkv, b_qkv, wo, bo)


def _reference_mha(query, mask, params, n_heads):
    """Pure-JAX (f32) reference mirroring the PyTorch forward."""
    B, L, D = query.shape
    dh = D // n_heads
    scale = math.sqrt(dh)
    wq_t, bq, wk_t, bk, wv_t, bv, wo_t, bo = params

    def prep(t):
        return t.reshape(B, L, n_heads, dh).transpose(0, 2, 1, 3).reshape(B * n_heads, L, dh)

    q = prep(query @ wq_t + bq)
    k = prep(query @ wk_t + bk)
    v = prep(query @ wv_t + bv)

    dot = jnp.einsum("bqd,bkd->bqk", q, k)
    attn_mask = (mask == 0).reshape(B, 1, 1, L)
    attn_mask = jnp.broadcast_to(attn_mask, (B, n_heads, L, L)).reshape(B * n_heads, L, L)
    dot = jnp.where(attn_mask, -1e20, dot)
    w = jax.nn.softmax(dot / scale, axis=-1)
    ctx = jnp.einsum("bqk,bkd->bqd", w, v)
    ctx = ctx.reshape(B, n_heads, L, dh).transpose(0, 2, 1, 3).reshape(B, L, D)
    return ctx @ wo_t + bo


def make_params(key, dim):
    """Deterministic parameter init mimicking the module's __init__ shapes.
    Weights: xavier_normal_ (std = sqrt(2/(dim+dim))); biases: small uniform."""
    std = math.sqrt(2.0 / (dim + dim))
    bound = 1.0 / math.sqrt(dim)
    keys = jax.random.split(key, 8)
    params = []
    for i in range(4):
        w = jax.random.normal(keys[2 * i], (dim, dim), jnp.float32) * std
        b = jax.random.uniform(keys[2 * i + 1], (1, dim), jnp.float32, -bound, bound)
        params.extend([w.T, b])   # store transposed: (in_dim, out_dim)
    return tuple(params)


if __name__ == "__main__":
    B, L, D, H = 2, 8, 32, 4

    root = jax.random.PRNGKey(0)
    k_q, k_p = jax.random.split(root)
    query = jax.random.normal(k_q, (B, L, D), jnp.float32)

    # mask: 1 = attend, 0 = masked.  Second example has its last 2 keys masked.
    mask = jnp.ones((B, L), jnp.float32)
    mask = mask.at[1, -2:].set(0.0)

    params = make_params(k_p, D)

    out = multi_head_attention(query, mask, params, H)
    out = jax.block_until_ready(out)

    ref = _reference_mha(query, mask, params, H)
    # bf16 MXU inputs + approx reciprocal => slightly looser tolerance.
    np.testing.assert_allclose(np.asarray(out), np.asarray(ref), rtol=3e-2, atol=3e-2)

    print("KERNEL_OK")
</pallas_src>

<mosaic_0001>
module attributes {stable_mosaic.version = 11 : i64} {
  func.func @_mha_kernel(%arg0: i32, %arg1: memref<1x8x32xf32, #tpu.memory_space<vmem>>, %arg2: memref<1x1x8xf32, #tpu.memory_space<vmem>>, %arg3: memref<32x96xbf16, #tpu.memory_space<vmem>>, %arg4: memref<1x96xf32, #tpu.memory_space<vmem>>, %arg5: memref<32x32xbf16, #tpu.memory_space<vmem>>, %arg6: memref<1x32xf32, #tpu.memory_space<vmem>>, %arg7: memref<1x8x32xf32, #tpu.memory_space<vmem>>) attributes {dimension_semantics = [#tpu.dimension_semantics<parallel>], iteration_bounds = array<i64: 2>, scalar_prefetch = 0 : i64, scratch_operands = 0 : i64, tpu.core_type = #tpu.core_type<tc>, window_params = [{transform_indices = @transform_0, window_bounds = array<i64: 1, 8, 32>}, {transform_indices = @transform_1, window_bounds = array<i64: 1, 1, 8>}, {pipeline_mode = #tpu.pipeline_mode<synchronous>, transform_indices = @transform_2, window_bounds = array<i64: 32, 96>}, {pipeline_mode = #tpu.pipeline_mode<synchronous>, transform_indices = @transform_3, window_bounds = array<i64: 1, 96>}, {pipeline_mode = #tpu.pipeline_mode<synchronous>, transform_indices = @transform_4, window_bounds = array<i64: 32, 32>}, {pipeline_mode = #tpu.pipeline_mode<synchronous>, transform_indices = @transform_5, window_bounds = array<i64: 1, 32>}, {transform_indices = @transform_6, window_bounds = array<i64: 1, 8, 32>}]} {
    %c0 = arith.constant 0 : index
    %c0_0 = arith.constant 0 : index
    %c0_1 = arith.constant 0 : index
    %0 = vector.load %arg1[%c0, %c0_0, %c0_1] : memref<1x8x32xf32, #tpu.memory_space<vmem>>, vector<1x8x32xf32>
    %1 = vector.shape_cast %0 : vector<1x8x32xf32> to vector<8x32xf32>
    %c0_2 = arith.constant 0 : index
    %c0_3 = arith.constant 0 : index
    %c0_4 = arith.constant 0 : index
    %2 = vector.load %arg2[%c0_2, %c0_3, %c0_4] : memref<1x1x8xf32, #tpu.memory_space<vmem>>, vector<1x1x8xf32>
    %3 = vector.shape_cast %2 : vector<1x1x8xf32> to vector<1x8xf32>
    %4 = arith.truncf %1 : vector<8x32xf32> to vector<8x32xbf16>
    %c0_5 = arith.constant 0 : index
    %c0_6 = arith.constant 0 : index
    %5 = vector.load %arg3[%c0_5, %c0_6] : memref<32x96xbf16, #tpu.memory_space<vmem>>, vector<32x96xbf16>
    %cst = arith.constant dense<0.000000e+00> : vector<8x96xf32>
    %6 = tpu.matmul %4, %5, %cst {dimension_numbers = #tpu.dot_dimension_numbers<[1], [0], [0], [1], [0, 0, 1, 1], [], []>} : vector<8x32xbf16>, vector<32x96xbf16>, vector<8x96xf32> -> vector<8x96xf32>
    %c0_7 = arith.constant 0 : index
    %c0_8 = arith.constant 0 : index
    %7 = vector.load %arg4[%c0_7, %c0_8] : memref<1x96xf32, #tpu.memory_space<vmem>>, vector<1x96xf32>
    %8 = vector.broadcast %7 : vector<1x96xf32> to vector<8x96xf32>
    %9 = arith.addf %6, %8 : vector<8x96xf32>
    %10 = vector.extract_strided_slice %9 {offsets = [0, 0], sizes = [8, 32], strides = [1, 1]} : vector<8x96xf32> to vector<8x32xf32>
    %cst_9 = arith.constant 0.353553385 : f32
    %11 = vector.broadcast %cst_9 : f32 to vector<8x32xf32>
    %12 = arith.mulf %10, %11 : vector<8x32xf32>
    %13 = vector.extract_strided_slice %9 {offsets = [0, 32], sizes = [8, 32], strides = [1, 1]} : vector<8x96xf32> to vector<8x32xf32>
    %14 = vector.extract_strided_slice %9 {offsets = [0, 64], sizes = [8, 32], strides = [1, 1]} : vector<8x96xf32> to vector<8x32xf32>
    %15 = vector.shape_cast %12 : vector<8x32xf32> to vector<8x4x8xf32>
    %16 = tpu.transpose %15, [1, 0, 2] : vector<8x4x8xf32> -> vector<4x8x8xf32>
    %17 = arith.truncf %16 : vector<4x8x8xf32> to vector<4x8x8xbf16>
    %18 = vector.shape_cast %13 : vector<8x32xf32> to vector<8x4x8xf32>
    %19 = tpu.transpose %18, [1, 0, 2] : vector<8x4x8xf32> -> vector<4x8x8xf32>
    %20 = arith.truncf %19 : vector<4x8x8xf32> to vector<4x8x8xbf16>
    %21 = vector.shape_cast %14 : vector<8x32xf32> to vector<8x4x8xf32>
    %22 = tpu.transpose %21, [1, 0, 2] : vector<8x4x8xf32> -> vector<4x8x8xf32>
    %23 = arith.truncf %22 : vector<4x8x8xf32> to vector<4x8x8xbf16>
    "tpu.trace_start"() <{level = 10 : i32, message = "hqd,hkd->hqk"}> : () -> ()
    %cst_10 = arith.constant dense<0.000000e+00> : vector<4x8x8xf32>
    %24 = tpu.matmul %17, %20, %cst_10 {dimension_numbers = #tpu.dot_dimension_numbers<[2], [2], [1], [1], [0, 0, 0, 1, 1, 1], [0], [0]>} : vector<4x8x8xbf16>, vector<4x8x8xbf16>, vector<4x8x8xf32> -> vector<4x8x8xf32>
    %cst_11 = arith.constant 0.000000e+00 : f32
    "tpu.trace_stop"() : () -> ()
    %25 = vector.broadcast %cst_11 : f32 to vector<1x8xf32>
    %26 = arith.cmpf oeq, %3, %25 : vector<1x8xf32>
    %cst_12 = arith.constant -1.000000e+20 : f32
    %cst_13 = arith.constant 0.000000e+00 : f32
    %27 = vector.broadcast %cst_12 : f32 to vector<1x8xf32>
    %28 = vector.broadcast %cst_13 : f32 to vector<1x8xf32>
    %29 = arith.select %26, %27, %28 : vector<1x8xi1>, vector<1x8xf32>
    %30 = vector.shape_cast %29 : vector<1x8xf32> to vector<1x1x8xf32>
    %31 = vector.broadcast %30 : vector<1x1x8xf32> to vector<4x8x8xf32>
    %32 = arith.addf %24, %31 : vector<4x8x8xf32>
    %cst_14 = arith.constant dense<0xFF800000> : vector<4x8xf32>
    %33 = vector.multi_reduction <maximumf>, %32, %cst_14 [2] : vector<4x8x8xf32> to vector<4x8xf32>
    %34 = vector.shape_cast %33 : vector<4x8xf32> to vector<4x8x1xf32>
    %35 = vector.broadcast %34 : vector<4x8x1xf32> to vector<4x8x8xf32>
    %36 = arith.subf %32, %35 : vector<4x8x8xf32>
    %37 = math.exp %36 : vector<4x8x8xf32>
    %cst_15 = arith.constant dense<0.000000e+00> : vector<4x8xf32>
    %38 = vector.multi_reduction <add>, %37, %cst_15 [2] : vector<4x8x8xf32> to vector<4x8xf32>
    %39 = vector.shape_cast %38 : vector<4x8xf32> to vector<4x8x1xf32>
    %40 = tpu.reciprocal %39 {approx = true} : vector<4x8x1xf32> -> vector<4x8x1xf32>
    %41 = vector.broadcast %40 : vector<4x8x1xf32> to vector<4x8x8xf32>
    %42 = arith.mulf %37, %41 : vector<4x8x8xf32>
    %43 = arith.truncf %42 : vector<4x8x8xf32> to vector<4x8x8xbf16>
    "tpu.trace_start"() <{level = 10 : i32, message = "hqk,hkd->hqd"}> : () -> ()
    %cst_16 = arith.constant dense<0.000000e+00> : vector<4x8x8xf32>
    %44 = tpu.matmul %43, %23, %cst_16 {dimension_numbers = #tpu.dot_dimension_numbers<[2], [1], [1], [2], [0, 0, 0, 1, 1, 2], [0], [0]>} : vector<4x8x8xbf16>, vector<4x8x8xbf16>, vector<4x8x8xf32> -> vector<4x8x8xf32>
    "tpu.trace_stop"() : () -> ()
    %45 = tpu.transpose %44, [1, 0, 2] : vector<4x8x8xf32> -> vector<8x4x8xf32>
    %46 = vector.shape_cast %45 : vector<8x4x8xf32> to vector<8x32xf32>
    %47 = arith.truncf %46 : vector<8x32xf32> to vector<8x32xbf16>
    %c0_17 = arith.constant 0 : index
    %c0_18 = arith.constant 0 : index
    %48 = vector.load %arg5[%c0_17, %c0_18] : memref<32x32xbf16, #tpu.memory_space<vmem>>, vector<32x32xbf16>
    %cst_19 = arith.constant dense<0.000000e+00> : vector<8x32xf32>
    %49 = tpu.matmul %47, %48, %cst_19 {dimension_numbers = #tpu.dot_dimension_numbers<[1], [0], [0], [1], [0, 0, 1, 1], [], []>} : vector<8x32xbf16>, vector<32x32xbf16>, vector<8x32xf32> -> vector<8x32xf32>
    %c0_20 = arith.constant 0 : index
    %c0_21 = arith.constant 0 : index
    %50 = vector.load %arg6[%c0_20, %c0_21] : memref<1x32xf32, #tpu.memory_space<vmem>>, vector<1x32xf32>
    %51 = vector.broadcast %50 : vector<1x32xf32> to vector<8x32xf32>
    %52 = arith.addf %49, %51 : vector<8x32xf32>
    %c0_22 = arith.constant 0 : index
    %c0_23 = arith.constant 0 : index
    %c0_24 = arith.constant 0 : index
    %53 = vector.load %arg7[%c0_22, %c0_23, %c0_24] : memref<1x8x32xf32, #tpu.memory_space<vmem>>, vector<1x8x32xf32>
    %54 = vector.shape_cast %53 : vector<1x8x32xf32> to vector<8x32xf32>
    %55 = vector.shape_cast %52 : vector<8x32xf32> to vector<1x8x32xf32>
    tpu.vector_store %arg7[%c0_22, %c0_23, %c0_24], %55 {strides = array<i32>} : memref<1x8x32xf32, #tpu.memory_space<vmem>>, vector<1x8x32xf32>,
    return
  }
  func.func @transform_0(%arg0: i32) -> (i32, i32, i32) {
    %c0_i32 = arith.constant 0 : i32
    %c0_i32_0 = arith.constant 0 : i32
    %c0_i32_1 = arith.constant 0 : i32
    return %arg0, %c0_i32, %c0_i32_0 : i32, i32, i32
  }
  func.func @transform_1(%arg0: i32) -> (i32, i32, i32) {
    %c0_i32 = arith.constant 0 : i32
    %c0_i32_0 = arith.constant 0 : i32
    %c0_i32_1 = arith.constant 0 : i32
    return %arg0, %c0_i32, %c0_i32_0 : i32, i32, i32
  }
  func.func @transform_2(%arg0: i32) -> (i32, i32) {
    %c0_i32 = arith.constant 0 : i32
    %c0_i32_0 = arith.constant 0 : i32
    %c0_i32_1 = arith.constant 0 : i32
    return %c0_i32, %c0_i32_0 : i32, i32
  }
  func.func @transform_3(%arg0: i32) -> (i32, i32) {
    %c0_i32 = arith.constant 0 : i32
    %c0_i32_0 = arith.constant 0 : i32
    %c0_i32_1 = arith.constant 0 : i32
    return %c0_i32, %c0_i32_0 : i32, i32
  }
  func.func @transform_4(%arg0: i32) -> (i32, i32) {
    %c0_i32 = arith.constant 0 : i32
    %c0_i32_0 = arith.constant 0 : i32
    %c0_i32_1 = arith.constant 0 : i32
    return %c0_i32, %c0_i32_0 : i32, i32
  }
  func.func @transform_5(%arg0: i32) -> (i32, i32) {
    %c0_i32 = arith.constant 0 : i32
    %c0_i32_0 = arith.constant 0 : i32
    %c0_i32_1 = arith.constant 0 : i32
    return %c0_i32, %c0_i32_0 : i32, i32
  }
  func.func @transform_6(%arg0: i32) -> (i32, i32, i32) {
    %c0_i32 = arith.constant 0 : i32
    %c0_i32_0 = arith.constant 0 : i32
    %c0_i32_1 = arith.constant 0 : i32
    return %arg0, %c0_i32, %c0_i32_0 : i32, i32, i32
  }
}

</mosaic_0001>

<llo_original>
// kernel: tpu_custom_call.1
$region0: #{tpu_custom_call.1}
  #allocation0 [shape = 'u32[]', space=smem, size = 0x4, offset = 0x4, fixed_abs, tag = 'smem constant byte address 0x4 - core index']
  #allocation1 [shape = 'u32[72,128]{1,0:T(1,128)}', space=vmem, size = 0x9000, scoped, tag = 'internal scratch']
  %s0 = inlined_call_operand.hbm [shape: f32[2,8,32], index: 0, kind: input, shape index: {}]
  %s1 = inlined_call_operand.hbm [shape: f32[2,1,8], index: 1, kind: input, shape index: {}]
  %s2 = inlined_call_operand.hbm [shape: bf16[32,96], index: 2, kind: input, shape index: {}]
  %s3 = inlined_call_operand.vmem [shape: f32[1,96], index: 3, kind: input, shape index: {}]
  %s4 = inlined_call_operand.hbm [shape: bf16[32,32], index: 4, kind: input, shape index: {}]
  %s5 = inlined_call_operand.vmem [shape: f32[1,32], index: 5, kind: input, shape index: {}]
  %s6 = inlined_call_operand.hbm [shape: f32[2,8,32], index: 6, kind: output, shape index: {}]
  %s7 = sld [smem:[#allocation0]]
  $region73: #{tpu_custom_call.1} parent=0
    _
  %s9 = ssub.s32 1, %s7
  %s10 = scalar_select 0, %s9, %s7
  $region1: #{tpu_custom_call.1} parent=0
    #allocation2 [shape = 'u8[8192]{0}', space=vmem, size = 0x2000, scoped, tag = 'input window, operand 0']
    #allocation3 [shape = 's32[2]{0}', space=sflag, size = 0x8, scoped, tag = 'scoped memory for tpu_custom_call.1']
    #allocation4 [shape = 's32[2]{0}', space=sflag, size = 0x8, scoped, tag = 'scoped memory for tpu_custom_call.1']
    #allocation5 [shape = 'u8[1024]{0}', space=vmem, size = 0x400, scoped, tag = 'input window, operand 1']
    #allocation6 [shape = 's32[2]{0}', space=sflag, size = 0x8, scoped, tag = 'scoped memory for tpu_custom_call.1']
    #allocation7 [shape = 'u8[8192]{0}', space=vmem, size = 0x2000, scoped, tag = 'input window, operand 2, single buffered']
    #allocation8 [shape = 'u8[8192]{0}', space=vmem, size = 0x2000, scoped, tag = 'input window, operand 4, single buffered']
    #allocation9 [shape = 's32[1]{0}', space=sflag, size = 0x4, scoped, tag = 'scoped memory for tpu_custom_call.1']
    #allocation10 [shape = 'u8[8192]{0}', space=vmem, size = 0x2000, scoped, tag = 'output window, operand 0']
    %11 = vsyncpa [#allocation3], 0
    %s12 = scalar_lea.sflag [#allocation3], 1
    %13 = vsyncpa %s12, 0
    %14 = vsyncpa [#allocation6], 0
    %s15 = scalar_lea.sflag [#allocation6], 1
    %16 = vsyncpa %s15, 0
    %17 = vsyncpa [#allocation9], 0
    %18 = vsyncpa [#allocation4], 0
    %s19 = scalar_lea.sflag [#allocation4], 1
    %20 = vsyncpa %s19, 0
    loop: start=0, step=1, limit=4
    $region2: #{tpu_custom_call.1} parent=1 // loop_pre_header
      _
    $region3: #{tpu_custom_call.1} parent=1 // loop_header
      %s22 = sphi 0, %s26
      %p23 = scmp.ge.s32.totalorder %s22, 4
      %s32 = sphi 0, %s34
      %s35 = sphi 0, %s32
      %s36 = sphi 0, %s35
      %s52 = sphi 0, %s36
      %s58 = sphi 0, %s60
      %s61 = sphi 0, %s58
      %s62 = sphi 0, %s61
      %s78 = sphi 0, %s62
      %s82 = sphi 0, %s82
      %s84 = sphi 0, %s82
      %s85 = sphi 0, %s84
      %s99 = sphi 0, %s85
      %s103 = sphi 0, %s103
      %s105 = sphi 0, %s103
      %s106 = sphi 0, %s105
      %s120 = sphi 0, %s106
      %s124 = sphi 0, %s124
      %s126 = sphi 0, %s124
      %s127 = sphi 0, %s126
      %s141 = sphi 0, %s127
      %s145 = sphi 0, %s145
      %s147 = sphi 0, %s145
      %s148 = sphi 0, %s147
      %s162 = sphi 0, %s148
      %s168 = sphi 0, %s170
      %s171 = sphi 0, %s168
      %s172 = sphi 0, %s171
      %s188 = sphi 0, %s172
    $region4: #{tpu_custom_call.1} parent=1 // loop_header_branch
      %25 = sbr.rel (%p23) target = $region8
    $region5: #{tpu_custom_call.1} parent=1 // loop_body
      %s27 = ssub.s32 %s22, 1
      %s28 = ssub.s32 %s22, 2
      %s29 = sadd.s32 %s22, 1
      %s30 = ssub.s32 %s22, %s29
      %p31 = scmp.eq.s32.totalorder %s30, 0
      %s33 = sadd.s32 %s32, 1
      %s34 = scalar_select %p31, %s32, %s33
      %p37 = pneg %p31
      %p38 = scmp.eq.s32.totalorder %s22, 1
      %p39 = por %p37, %p38
      %p40 = scmp.ne.s32.totalorder %s32, %s35
      %p41 = scmp.eq.s32.totalorder %s22, 0
      %p42 = por %p40, %p41
      %p43 = scmp.ne.s32.totalorder %s32, %s35
      %p44 = scmp.eq.s32.totalorder %s27, 1
      %p45 = por %p43, %p44
      %p46 = scmp.ne.s32.totalorder %s35, %s36
      %p47 = scmp.eq.s32.totalorder %s27, 0
      %p48 = por %p46, %p47
      %p49 = scmp.ne.s32.totalorder %s35, %s36
      %p50 = scmp.eq.s32.totalorder %s28, 1
      %p51 = por %p49, %p50
      %p53 = scmp.ne.s32.totalorder %s36, %s52
      %p54 = scmp.eq.s32.totalorder %s28, 0
      %p55 = por %p53, %p54
      %s56 = ssub.s32 %s22, %s29
      %p57 = scmp.eq.s32.totalorder %s56, 0
      %s59 = sadd.s32 %s58, 1
      %s60 = scalar_select %p57, %s58, %s59
      %p63 = pneg %p57
      %p64 = scmp.eq.s32.totalorder %s22, 1
      %p65 = por %p63, %p64
      %p66 = scmp.ne.s32.totalorder %s58, %s61
      %p67 = scmp.eq.s32.totalorder %s22, 0
      %p68 = por %p66, %p67
      %p69 = scmp.ne.s32.totalorder %s58, %s61
      %p70 = scmp.eq.s32.totalorder %s27, 1
      %p71 = por %p69, %p70
      %p72 = scmp.ne.s32.totalorder %s61, %s62
      %p73 = scmp.eq.s32.totalorder %s27, 0
      %p74 = por %p72, %p73
      %p75 = scmp.ne.s32.totalorder %s61, %s62
      %p76 = scmp.eq.s32.totalorder %s28, 1
      %p77 = por %p75, %p76
      %p79 = scmp.ne.s32.totalorder %s62, %s78
      %p80 = scmp.eq.s32.totalorder %s28, 0
      %p81 = por %p79, %p80
      %s83 = sadd.s32 %s82, 1
      %p86 = scmp.eq.s32.totalorder %s22, 1
      %p87 = scmp.ne.s32.totalorder %s82, %s84
      %p88 = scmp.eq.s32.totalorder %s22, 0
      %p89 = por %p87, %p88
      %p90 = scmp.ne.s32.totalorder %s82, %s84
      %p91 = scmp.eq.s32.totalorder %s27, 1
      %p92 = por %p90, %p91
      %p93 = scmp.ne.s32.totalorder %s84, %s85
      %p94 = scmp.eq.s32.totalorder %s27, 0
      %p95 = por %p93, %p94
      %p96 = scmp.ne.s32.totalorder %s84, %s85
      %p97 = scmp.eq.s32.totalorder %s28, 1
      %p98 = por %p96, %p97
      %p100 = scmp.ne.s32.totalorder %s85, %s99
      %p101 = scmp.eq.s32.totalorder %s28, 0
      %p102 = por %p100, %p101
      %s104 = sadd.s32 %s103, 1
      %p107 = scmp.eq.s32.totalorder %s22, 1
      %p108 = scmp.ne.s32.totalorder %s103, %s105
      %p109 = scmp.eq.s32.totalorder %s22, 0
      %p110 = por %p108, %p109
      %p111 = scmp.ne.s32.totalorder %s103, %s105
      %p112 = scmp.eq.s32.totalorder %s27, 1
      %p113 = por %p111, %p112
      %p114 = scmp.ne.s32.totalorder %s105, %s106
      %p115 = scmp.eq.s32.totalorder %s27, 0
      %p116 = por %p114, %p115
      %p117 = scmp.ne.s32.totalorder %s105, %s106
      %p118 = scmp.eq.s32.totalorder %s28, 1
      %p119 = por %p117, %p118
      %p121 = scmp.ne.s32.totalorder %s106, %s120
      %p122 = scmp.eq.s32.totalorder %s28, 0
      %p123 = por %p121, %p122
      %s125 = sadd.s32 %s124, 1
      %p128 = scmp.eq.s32.totalorder %s22, 1
      %p129 = scmp.ne.s32.totalorder %s124, %s126
      %p130 = scmp.eq.s32.totalorder %s22, 0
      %p131 = por %p129, %p130
      %p132 = scmp.ne.s32.totalorder %s124, %s126
      %p133 = scmp.eq.s32.totalorder %s27, 1
      %p134 = por %p132, %p133
      %p135 = scmp.ne.s32.totalorder %s126, %s127
      %p136 = scmp.eq.s32.totalorder %s27, 0
      %p137 = por %p135, %p136
      %p138 = scmp.ne.s32.totalorder %s126, %s127
      %p139 = scmp.eq.s32.totalorder %s28, 1
      %p140 = por %p138, %p139
      %p142 = scmp.ne.s32.totalorder %s127, %s141
      %p143 = scmp.eq.s32.totalorder %s28, 0
      %p144 = por %p142, %p143
      %s146 = sadd.s32 %s145, 1
      %p149 = scmp.eq.s32.totalorder %s22, 1
      %p150 = scmp.ne.s32.totalorder %s145, %s147
      %p151 = scmp.eq.s32.totalorder %s22, 0
      %p152 = por %p150, %p151
      %p153 = scmp.ne.s32.totalorder %s145, %s147
      %p154 = scmp.eq.s32.totalorder %s27, 1
      %p155 = por %p153, %p154
      %p156 = scmp.ne.s32.totalorder %s147, %s148
      %p157 = scmp.eq.s32.totalorder %s27, 0
      %p158 = por %p156, %p157
      %p159 = scmp.ne.s32.totalorder %s147, %s148
      %p160 = scmp.eq.s32.totalorder %s28, 1
      %p161 = por %p159, %p160
      %p163 = scmp.ne.s32.totalorder %s148, %s162
      %p164 = scmp.eq.s32.totalorder %s28, 0
      %p165 = por %p163, %p164
      %s166 = ssub.s32 %s22, %s29
      %p167 = scmp.eq.s32.totalorder %s166, 0
      %s169 = sadd.s32 %s168, 1
      %s170 = scalar_select %p167, %s168, %s169
      %p173 = pneg %p167
      %p174 = scmp.eq.s32.totalorder %s22, 1
      %p175 = por %p173, %p174
      %p176 = scmp.ne.s32.totalorder %s168, %s171
      %p177 = scmp.eq.s32.totalorder %s22, 0
      %p178 = por %p176, %p177
      %p179 = scmp.ne.s32.totalorder %s168, %s171
      %p180 = scmp.eq.s32.totalorder %s27, 1
      %p181 = por %p179, %p180
      %p182 = scmp.ne.s32.totalorder %s171, %s172
      %p183 = scmp.eq.s32.totalorder %s27, 0
      %p184 = por %p182, %p183
      %p185 = scmp.ne.s32.totalorder %s171, %s172
      %p186 = scmp.eq.s32.totalorder %s28, 1
      %p187 = por %p185, %p186
      %p189 = scmp.ne.s32.totalorder %s172, %s188
      %p190 = scmp.eq.s32.totalorder %s28, 0
      %p191 = por %p189, %p190
      %p192 = scmp.le.s32.totalorder 1, %s22
      %p193 = scmp.lt.s32.totalorder %s22, 3
      %p194 = pnand %p192, %p193
      %p195 = pneg %p194
      // Predicated region
      $region9: #{tpu_custom_call.1} parent=5 // pred_check
        _
      $region10: #{tpu_custom_call.1} parent=5 // pred_check_branch
        %197 = sbr.rel (%p194) target = $region12
      $region11: #{tpu_custom_call.1} parent=5 // pred_region
        %s198 = ssub.s32 %s22, 1
        // Predicated region
        $region13: #{tpu_custom_call.1} parent=11 // pred_check
          %p199 = pneg %p95
        $region14: #{tpu_custom_call.1} parent=11 // pred_check_branch
          %201 = sbr.rel (%p199) target = $region16
        $region15: #{tpu_custom_call.1} parent=11 // pred_region
          %203 = vsyncadd [#allocation6], 0
          %s204 = sshll.u32 %s2, 4
          %s205 = int_to_ptr.hbm [resolvable:$true] %s204
          %s206 = sshll.u32 [#allocation7], 4
          %s207 = int_to_ptr.vmem [resolvable:$true] %s206
          %212 = dma.hbm_to_vmem [thread:$0]  %s205, 256, %s207, [#allocation6], 64, 64, 4
        $region16: #{tpu_custom_call.1} parent=11 // pred_fallthru
          _
        // Predicated region
        $region17: #{tpu_custom_call.1} parent=11 // pred_check
          %p213 = pneg %p116
        $region18: #{tpu_custom_call.1} parent=11 // pred_check_branch
          %215 = sbr.rel (%p213) target = $region20
        $region19: #{tpu_custom_call.1} parent=11 // pred_region
          _
        $region20: #{tpu_custom_call.1} parent=11 // pred_fallthru
          _
        // Predicated region
        $region21: #{tpu_custom_call.1} parent=11 // pred_check
          %p216 = pneg %p137
        $region22: #{tpu_custom_call.1} parent=11 // pred_check_branch
          %218 = sbr.rel (%p216) target = $region24
        $region23: #{tpu_custom_call.1} parent=11 // pred_region
          %220 = vsyncadd [#allocation9], 0
          %s221 = sshll.u32 %s4, 4
          %s222 = int_to_ptr.hbm [resolvable:$true] %s221
          %s223 = sshll.u32 [#allocation8], 4
          %s224 = int_to_ptr.vmem [resolvable:$true] %s223
          %229 = dma.hbm_to_vmem [thread:$0]  %s222, 256, %s224, [#allocation9], 64, 64, 4
        $region24: #{tpu_custom_call.1} parent=11 // pred_fallthru
          _
        // Predicated region
        $region25: #{tpu_custom_call.1} parent=11 // pred_check
          %p230 = pneg %p158
        $region26: #{tpu_custom_call.1} parent=11 // pred_check_branch
          %232 = sbr.rel (%p230) target = $region28
        $region27: #{tpu_custom_call.1} parent=11 // pred_region
          _
        $region28: #{tpu_custom_call.1} parent=11 // pred_fallthru
          _
      $region12: #{tpu_custom_call.1} parent=5 // pred_fallthru
        _
      %p233 = scmp.lt.s32.totalorder %s22, 2
      // Predicated region
      $region29: #{tpu_custom_call.1} parent=5 // pred_check
        %p234 = pneg %p233
      $region30: #{tpu_custom_call.1} parent=5 // pred_check_branch
        %236 = sbr.rel (%p234) target = $region32
      $region31: #{tpu_custom_call.1} parent=5 // pred_region
        // Predicated region
        $region33: #{tpu_custom_call.1} parent=31 // pred_check
          %p237 = pneg %p42
        $region34: #{tpu_custom_call.1} parent=31 // pred_check_branch
          %239 = sbr.rel (%p237) target = $region36
        $region35: #{tpu_custom_call.1} parent=31 // pred_region
          %s240 = sand.u32 %s32, 1
          %s241 = scalar_lea.sflag [#allocation3], %s240
          %s242 = sand.u32 %s32, 1
          %s243 = smul.addr %s242, 8
          %s244 = scalar_lea.vmem [#allocation2], %s243
          %246 = vsyncadd %s241, 0
          %s247 = smul.addr %s22, 8
          %s248 = scalar_lea.hbm %s0, %s247
          %s250 = sshll.u32 %s248, 4
          %s251 = int_to_ptr.hbm [resolvable:$true] %s250
          %s252 = sshll.u32 %s244, 4
          %s253 = int_to_ptr.vmem [resolvable:$true] %s252
          %255 = dma.hbm_to_vmem [thread:$0]  %s251, 128, %s253, %s241
        $region36: #{tpu_custom_call.1} parent=31 // pred_fallthru
          _
        // Predicated region
        $region37: #{tpu_custom_call.1} parent=31 // pred_check
          %p256 = pneg %p68
        $region38: #{tpu_custom_call.1} parent=31 // pred_check_branch
          %258 = sbr.rel (%p256) target = $region40
        $region39: #{tpu_custom_call.1} parent=31 // pred_region
          %s259 = sand.u32 %s22, 1
          %s260 = scalar_lea.sflag [#allocation6], %s259
          %s261 = sand.u32 %s58, 1
          %s262 = scalar_lea.vmem [#allocation5], %s261
          %264 = vsyncadd %s260, 0
          %s265 = scalar_lea.hbm %s1, %s22
          %s267 = sshll.u32 %s265, 4
          %s268 = int_to_ptr.hbm [resolvable:$true] %s267
          %s269 = sshll.u32 %s262, 4
          %s270 = int_to_ptr.vmem [resolvable:$true] %s269
          %272 = dma.hbm_to_vmem [thread:$0]  %s268, 16, %s270, %s260
        $region40: #{tpu_custom_call.1} parent=31 // pred_fallthru
          _
      $region32: #{tpu_custom_call.1} parent=5 // pred_fallthru
        _
      %p273 = scmp.le.s32.totalorder 1, %s22
      %p274 = scmp.lt.s32.totalorder %s22, 3
      %p275 = pnand %p273, %p274
      %p276 = pneg %p275
      // Predicated region
      $region41: #{tpu_custom_call.1} parent=5 // pred_check
        _
      $region42: #{tpu_custom_call.1} parent=5 // pred_check_branch
        %278 = sbr.rel (%p275) target = $region44
      $region43: #{tpu_custom_call.1} parent=5 // pred_region
        %s279 = ssub.s32 %s22, 1
        %s280 = sand.u32 %s35, 1
        %s281 = scalar_lea.sflag [#allocation3], %s280
        %s282 = sand.u32 %s35, 1
        %s283 = smul.addr %s282, 8
        %s284 = scalar_lea.vmem [#allocation2], %s283
        // Predicated region
        $region45: #{tpu_custom_call.1} parent=43 // pred_check
          %p285 = pneg %p48
        $region46: #{tpu_custom_call.1} parent=43 // pred_check_branch
          %287 = sbr.rel (%p285) target = $region48
        $region47: #{tpu_custom_call.1} parent=43 // pred_region
          %289 = dma.done %s281, 128
        $region48: #{tpu_custom_call.1} parent=43 // pred_fallthru
          _
        %s290 = sand.u32 %s27, 1
        %s291 = scalar_lea.sflag [#allocation6], %s290
        %s292 = sand.u32 %s61, 1
        %s293 = scalar_lea.vmem [#allocation5], %s292
        // Predicated region
        $region49: #{tpu_custom_call.1} parent=43 // pred_check
          %p294 = pneg %p74
        $region50: #{tpu_custom_call.1} parent=43 // pred_check_branch
          %296 = sbr.rel (%p294) target = $region52
        $region51: #{tpu_custom_call.1} parent=43 // pred_region
          %298 = dma.done %s291, 16
        $region52: #{tpu_custom_call.1} parent=43 // pred_fallthru
          _
        // Predicated region
        $region53: #{tpu_custom_call.1} parent=43 // pred_check
          %p299 = pneg %p95
        $region54: #{tpu_custom_call.1} parent=43 // pred_check_branch
          %301 = sbr.rel (%p299) target = $region56
        $region55: #{tpu_custom_call.1} parent=43 // pred_region
          %303 = dma.done [#allocation6], 256
        $region56: #{tpu_custom_call.1} parent=43 // pred_fallthru
          _
        // Predicated region
        $region57: #{tpu_custom_call.1} parent=43 // pred_check
          %p304 = pneg %p137
        $region58: #{tpu_custom_call.1} parent=43 // pred_check_branch
          %306 = sbr.rel (%p304) target = $region60
        $region59: #{tpu_custom_call.1} parent=43 // pred_region
          %308 = dma.done [#allocation9], 256
        $region60: #{tpu_custom_call.1} parent=43 // pred_fallthru
          _
        %s309 = sand.u32 %s35, 1
        %s310 = scalar_lea.sflag [#allocation3], %s309
        %s311 = sand.u32 %s35, 1
        %s312 = smul.addr %s311, 8
        %s313 = scalar_lea.vmem [#allocation2], %s312
        %p314 = pneg %p48
        %p315 = pneg %p45
        %s316 = sand.u32 %s27, 1
        %s317 = scalar_lea.sflag [#allocation6], %s316
        %s318 = sand.u32 %s61, 1
        %s319 = scalar_lea.vmem [#allocation5], %s318
        %p320 = pneg %p74
        %p321 = pneg %p71
        %p322 = pneg %p95
        %p323 = pneg %p92
        %p324 = pneg %p116
        %p325 = pneg %p113
        %p326 = pneg %p137
        %p327 = pneg %p134
        %p328 = pneg %p158
        %p329 = pneg %p155
        %p330 = pneg %p184
        %p331 = pneg %p181
        %s332 = sand.u32 %s171, 1
        %s333 = scalar_lea.sflag [#allocation4], %s332
        %s334 = sand.u32 %s171, 1
        %s335 = smul.addr %s334, 8
        %s336 = scalar_lea.vmem [#allocation10], %s335
        %v338 = vld [vmem:[%s284] sm:$0xff]
        %v339 = vld [vmem:[%s293] sm:$0x1]
        %v340 = vpack.c.bf16 %v338, %v338
        %v341 = vld [vmem:[#allocation7] sm:$0xf]
        %v342 = vld [vmem:[#allocation7 + $0x4] sm:$0xf]
        %v343 = vld [vmem:[#allocation7 + $0x8] sm:$0xf]
        %v344 = vld [vmem:[#allocation7 + $0xc] sm:$0xf]
        %v345 = vld [vmem:[%s3] sm:$0x1]
        %v347 = vperm.slane %v345, 0
        %v353 = vunpack.c.l.b16 %v341
        %v354 = vunpack.c.l.b16 %v342
        %v355 = vunpack.c.l.b16 %v343
        %v356 = vunpack.c.l.b16 %v344
        %v357 = vpack.c.b16 %v354, %v353
        %v358 = vpack.c.b16 %v356, %v355
        %vm361 = vcmask 261120
        %v363 = vsel %vm361, %v340, 0
        %365 = vmatpush.bf16.msra.mxu0 0
        %366 = vmatpush.bf16.msra.mxu0 0
        %367 = vmatpush.bf16.msra.mxu0 0
        %368 = vmatpush.bf16.msra.mxu0 0
        %369 = vmatpush.bf16.msra.mxu0 0
        %370 = vmatpush.bf16.msra.mxu0 0
        %371 = vmatpush.bf16.msra.mxu0 %v358
        %372 = vmatpush.bf16.msra.mxu0 %v357
        %373 = vmatmul.bf16.gmra.mxu0 %v363
        %v374 = vpop.f32.mrf.mxu0
        %v375 = vadd.f32 %v347, %v374
        %v376 = vpop.f32.mrf.mxu0
        %377 = vdwg.mxu0
        %v378 = vmul.f32 %v375, 0.35355338
        %380 = vrot.lane.b32.xlu0 %v378, 120
        %v381 = vpop.permute.xlu0 %380
        %383 = vrot.lane.b32.xlu0 %v378, 112
        %v384 = vpop.permute.xlu0 %383
        %386 = vrot.lane.b32.xlu0 %v378, 104
        %v387 = vpop.permute.xlu0 %386
        %v389 = vrot.slane %v384, 4
        %vm390 = vcmask 1047556
        %v391 = vsel %vm390, %v389, %v378
        %v392 = vrot.slane %v378, 4
        %v393 = vsel %vm390, %v384, %v392
        %v395 = vunpack.c.l.s4 1983009808
        %v396 = vunpack.c.0.s8 %v395
        %v397 = vperm.slane %v391, %v396
        %v399 = vunpack.c.l.s4 1983009808
        %v400 = vunpack.c.0.s8 %v399
        %v401 = vperm.slane %v393, %v400
        %v402 = vrot.slane %v387, 4
        %v403 = vsel %vm390, %v402, %v381
        %v404 = vrot.slane %v381, 4
        %v405 = vsel %vm390, %v387, %v404
        %v407 = vunpack.c.l.s4 1983009808
        %v408 = vunpack.c.0.s8 %v407
        %v409 = vperm.slane %v403, %v408
        %v411 = vunpack.c.l.s4 1983009808
        %v412 = vunpack.c.0.s8 %v411
        %v413 = vperm.slane %v405, %v412
        %v414 = vrot.slane %v409, 4
        %v415 = vsel %vm390, %v414, %v397
        %v416 = vrot.slane %v397, 4
        %v417 = vsel %vm390, %v409, %v416
        %v419 = vunpack.c.l.s4 1934713408
        %v420 = vunpack.c.0.s8 %v419
        %v421 = vperm.slane %v415, %v420
        %v423 = vunpack.c.l.s4 1934713408
        %v424 = vunpack.c.0.s8 %v423
        %v425 = vperm.slane %v417, %v424
        %v426 = vrot.slane %v413, 4
        %v427 = vsel %vm390, %v426, %v401
        %v428 = vrot.slane %v401, 4
        %v429 = vsel %vm390, %v413, %v428
        %v431 = vunpack.c.l.s4 1934713408
        %v432 = vunpack.c.0.s8 %v431
        %v433 = vperm.slane %v427, %v432
        %v435 = vunpack.c.l.s4 1934713408
        %v436 = vunpack.c.0.s8 %v435
        %v437 = vperm.slane %v429, %v436
        %v438 = vrot.slane %v421, 4
        %v439 = vsel %vm390, 0.0, %v438
        %v440 = vrot.slane %v425, 4
        %v441 = vsel %vm390, 0.0, %v440
        %v442 = vrot.slane %v433, 4
        %v443 = vsel %vm390, 0.0, %v442
        %v444 = vrot.slane %v437, 4
        %v445 = vsel %vm390, 0.0, %v444
        %v446 = vsel %vm390, %v440, %v421
        %v448 = vunpack.c.l.s4 1983009808
        %v449 = vunpack.c.0.s8 %v448
        %v450 = vperm.slane %v446, %v449
        %v451 = vrot.slane %v441, 4
        %v452 = vsel %vm390, %v451, %v439
        %v454 = vunpack.c.l.s4 1983009808
        %v455 = vunpack.c.0.s8 %v454
        %v456 = vperm.slane %v452, %v455
        %v457 = vsel %vm390, %v444, %v433
        %v459 = vunpack.c.l.s4 1983009808
        %v460 = vunpack.c.0.s8 %v459
        %v461 = vperm.slane %v457, %v460
        %v462 = vrot.slane %v445, 4
        %v463 = vsel %vm390, %v462, %v443
        %v465 = vunpack.c.l.s4 1983009808
        %v466 = vunpack.c.0.s8 %v465
        %v467 = vperm.slane %v463, %v466
        %v468 = vrot.slane %v456, 4
        %v469 = vsel %vm390, %v468, %v450
        %v470 = vrot.slane %v450, 4
        %v471 = vsel %vm390, %v456, %v470
        %v473 = vunpack.c.l.s4 1934713408
        %v474 = vunpack.c.0.s8 %v473
        %v475 = vperm.slane %v469, %v474
        %v477 = vunpack.c.l.s4 1934713408
        %v478 = vunpack.c.0.s8 %v477
        %v479 = vperm.slane %v471, %v478
        %v480 = vrot.slane %v467, 4
        %v481 = vsel %vm390, %v480, %v461
        %v482 = vrot.slane %v461, 4
        %v483 = vsel %vm390, %v467, %v482
        %v485 = vunpack.c.l.s4 1934713408
        %v486 = vunpack.c.0.s8 %v485
        %v487 = vperm.slane %v481, %v486
        %v489 = vunpack.c.l.s4 1934713408
        %v490 = vunpack.c.0.s8 %v489
        %v491 = vperm.slane %v483, %v490
        %v492 = vrot.slane %v487, 4
        %v493 = vsel %vm390, %v492, %v475
        %v494 = vrot.slane %v475, 4
        %v495 = vsel %vm390, %v487, %v494
        %v496 = vrot.slane %v491, 4
        %v497 = vsel %vm390, %v496, %v479
        %v498 = vrot.slane %v479, 4
        %v499 = vsel %vm390, %v491, %v498
        %v500 = vpack.c.bf16 %v493, %v493
        %v501 = vpack.c.bf16 %v495, %v495
        %v502 = vpack.c.bf16 %v497, %v497
        %v503 = vpack.c.bf16 %v499, %v499
        %505 = vrot.lane.b32.xlu0 %v375, 120
        %v506 = vpop.permute.xlu0 %505
        %507 = vrot.lane.b32.xlu0 %v375, 112
        %v508 = vpop.permute.xlu0 %507
        %509 = vrot.lane.b32.xlu0 %v375, 104
        %v510 = vpop.permute.xlu0 %509
        %511 = vrot.lane.b32.xlu0 %v375, 96
        %v512 = vpop.permute.xlu0 %511
        %513 = vrot.lane.b32.xlu0 %v506, 96
        %v514 = vpop.permute.xlu0 %513
        %515 = vrot.lane.b32.xlu0 %v508, 96
        %v516 = vpop.permute.xlu0 %515
        %517 = vrot.lane.b32.xlu0 %v510, 96
        %v518 = vpop.permute.xlu0 %517
        %v523 = vrot.slane %v516, 4
        %v524 = vsel %vm390, %v523, %v512
        %v525 = vrot.slane %v512, 4
        %v526 = vsel %vm390, %v516, %v525
        %v528 = vunpack.c.l.s4 1983009808
        %v529 = vunpack.c.0.s8 %v528
        %v530 = vperm.slane %v524, %v529
        %v532 = vunpack.c.l.s4 1983009808
        %v533 = vunpack.c.0.s8 %v532
        %v534 = vperm.slane %v526, %v533
        %v535 = vrot.slane %v518, 4
        %v536 = vsel %vm390, %v535, %v514
        %v537 = vrot.slane %v514, 4
        %v538 = vsel %vm390, %v518, %v537
        %v540 = vunpack.c.l.s4 1983009808
        %v541 = vunpack.c.0.s8 %v540
        %v542 = vperm.slane %v536, %v541
        %v544 = vunpack.c.l.s4 1983009808
        %v545 = vunpack.c.0.s8 %v544
        %v546 = vperm.slane %v538, %v545
        %v547 = vrot.slane %v542, 4
        %v548 = vsel %vm390, %v547, %v530
        %v549 = vrot.slane %v530, 4
        %v550 = vsel %vm390, %v542, %v549
        %v552 = vunpack.c.l.s4 1934713408
        %v553 = vunpack.c.0.s8 %v552
        %v554 = vperm.slane %v548, %v553
        %v556 = vunpack.c.l.s4 1934713408
        %v557 = vunpack.c.0.s8 %v556
        %v558 = vperm.slane %v550, %v557
        %v559 = vrot.slane %v546, 4
        %v560 = vsel %vm390, %v559, %v534
        %v561 = vrot.slane %v534, 4
        %v562 = vsel %vm390, %v546, %v561
        %v564 = vunpack.c.l.s4 1934713408
        %v565 = vunpack.c.0.s8 %v564
        %v566 = vperm.slane %v560, %v565
        %v568 = vunpack.c.l.s4 1934713408
        %v569 = vunpack.c.0.s8 %v568
        %v570 = vperm.slane %v562, %v569
        %v571 = vrot.slane %v554, 4
        %v572 = vsel %vm390, 0.0, %v571
        %v573 = vrot.slane %v558, 4
        %v574 = vsel %vm390, 0.0, %v573
        %v575 = vrot.slane %v566, 4
        %v576 = vsel %vm390, 0.0, %v575
        %v577 = vrot.slane %v570, 4
        %v578 = vsel %vm390, 0.0, %v577
        %v579 = vsel %vm390, %v573, %v554
        %v581 = vunpack.c.l.s4 1983009808
        %v582 = vunpack.c.0.s8 %v581
        %v583 = vperm.slane %v579, %v582
        %v584 = vrot.slane %v574, 4
        %v585 = vsel %vm390, %v584, %v572
        %v587 = vunpack.c.l.s4 1983009808
        %v588 = vunpack.c.0.s8 %v587
        %v589 = vperm.slane %v585, %v588
        %v590 = vsel %vm390, %v577, %v566
        %v592 = vunpack.c.l.s4 1983009808
        %v593 = vunpack.c.0.s8 %v592
        %v594 = vperm.slane %v590, %v593
        %v595 = vrot.slane %v578, 4
        %v596 = vsel %vm390, %v595, %v576
        %v598 = vunpack.c.l.s4 1983009808
        %v599 = vunpack.c.0.s8 %v598
        %v600 = vperm.slane %v596, %v599
        %v601 = vrot.slane %v589, 4
        %v602 = vsel %vm390, %v601, %v583
        %v603 = vrot.slane %v583, 4
        %v604 = vsel %vm390, %v589, %v603
        %v606 = vunpack.c.l.s4 1934713408
        %v607 = vunpack.c.0.s8 %v606
        %v608 = vperm.slane %v602, %v607
        %v610 = vunpack.c.l.s4 1934713408
        %v611 = vunpack.c.0.s8 %v610
        %v612 = vperm.slane %v604, %v611
        %v613 = vrot.slane %v600, 4
        %v614 = vsel %vm390, %v613, %v594
        %v615 = vrot.slane %v594, 4
        %v616 = vsel %vm390, %v600, %v615
        %v618 = vunpack.c.l.s4 1934713408
        %v619 = vunpack.c.0.s8 %v618
        %v620 = vperm.slane %v614, %v619
        %v622 = vunpack.c.l.s4 1934713408
        %v623 = vunpack.c.0.s8 %v622
        %v624 = vperm.slane %v616, %v623
        %v625 = vrot.slane %v620, 4
        %v626 = vsel %vm390, %v625, %v608
        %v627 = vrot.slane %v608, 4
        %v628 = vsel %vm390, %v620, %v627
        %v629 = vrot.slane %v624, 4
        %v630 = vsel %vm390, %v629, %v612
        %v631 = vrot.slane %v612, 4
        %v632 = vsel %vm390, %v624, %v631
        %v633 = vpack.c.bf16 %v626, %v626
        %v634 = vpack.c.bf16 %v628, %v628
        %v635 = vpack.c.bf16 %v630, %v630
        %v636 = vpack.c.bf16 %v632, %v632
        %637 = vrot.lane.b32.xlu0 %v375, 64
        %v638 = vpop.permute.xlu0 %637
        %639 = vrot.lane.b32.xlu0 %v506, 64
        %v640 = vpop.permute.xlu0 %639
        %641 = vrot.lane.b32.xlu0 %v508, 64
        %v642 = vpop.permute.xlu0 %641
        %643 = vrot.lane.b32.xlu0 %v510, 64
        %v644 = vpop.permute.xlu0 %643
        %v649 = vrot.slane %v642, 4
        %v650 = vsel %vm390, %v649, %v638
        %v651 = vrot.slane %v638, 4
        %v652 = vsel %vm390, %v642, %v651
        %v654 = vunpack.c.l.s4 1983009808
        %v655 = vunpack.c.0.s8 %v654
        %v656 = vperm.slane %v650, %v655
        %v658 = vunpack.c.l.s4 1983009808
        %v659 = vunpack.c.0.s8 %v658
        %v660 = vperm.slane %v652, %v659
        %v661 = vrot.slane %v644, 4
        %v662 = vsel %vm390, %v661, %v640
        %v663 = vrot.slane %v640, 4
        %v664 = vsel %vm390, %v644, %v663
        %v666 = vunpack.c.l.s4 1983009808
        %v667 = vunpack.c.0.s8 %v666
        %v668 = vperm.slane %v662, %v667
        %v670 = vunpack.c.l.s4 1983009808
        %v671 = vunpack.c.0.s8 %v670
        %v672 = vperm.slane %v664, %v671
        %v673 = vrot.slane %v668, 4
        %v674 = vsel %vm390, %v673, %v656
        %v675 = vrot.slane %v656, 4
        %v676 = vsel %vm390, %v668, %v675
        %v678 = vunpack.c.l.s4 1934713408
        %v679 = vunpack.c.0.s8 %v678
        %v680 = vperm.slane %v674, %v679
        %v682 = vunpack.c.l.s4 1934713408
        %v683 = vunpack.c.0.s8 %v682
        %v684 = vperm.slane %v676, %v683
        %v685 = vrot.slane %v672, 4
        %v686 = vsel %vm390, %v685, %v660
        %v687 = vrot.slane %v660, 4
        %v688 = vsel %vm390, %v672, %v687
        %v690 = vunpack.c.l.s4 1934713408
        %v691 = vunpack.c.0.s8 %v690
        %v692 = vperm.slane %v686, %v691
        %v694 = vunpack.c.l.s4 1934713408
        %v695 = vunpack.c.0.s8 %v694
        %v696 = vperm.slane %v688, %v695
        %v697 = vrot.slane %v680, 4
        %v698 = vsel %vm390, 0.0, %v697
        %v699 = vrot.slane %v684, 4
        %v700 = vsel %vm390, 0.0, %v699
        %v701 = vrot.slane %v692, 4
        %v702 = vsel %vm390, 0.0, %v701
        %v703 = vrot.slane %v696, 4
        %v704 = vsel %vm390, 0.0, %v703
        %v705 = vsel %vm390, %v699, %v680
        %v707 = vunpack.c.l.s4 1983009808
        %v708 = vunpack.c.0.s8 %v707
        %v709 = vperm.slane %v705, %v708
        %v710 = vrot.slane %v700, 4
        %v711 = vsel %vm390, %v710, %v698
        %v713 = vunpack.c.l.s4 1983009808
        %v714 = vunpack.c.0.s8 %v713
        %v715 = vperm.slane %v711, %v714
        %v716 = vsel %vm390, %v703, %v692
        %v718 = vunpack.c.l.s4 1983009808
        %v719 = vunpack.c.0.s8 %v718
        %v720 = vperm.slane %v716, %v719
        %v721 = vrot.slane %v704, 4
        %v722 = vsel %vm390, %v721, %v702
        %v724 = vunpack.c.l.s4 1983009808
        %v725 = vunpack.c.0.s8 %v724
        %v726 = vperm.slane %v722, %v725
        %v727 = vrot.slane %v715, 4
        %v728 = vsel %vm390, %v727, %v709
        %v729 = vrot.slane %v709, 4
        %v730 = vsel %vm390, %v715, %v729
        %v732 = vunpack.c.l.s4 1934713408
        %v733 = vunpack.c.0.s8 %v732
        %v734 = vperm.slane %v728, %v733
        %v736 = vunpack.c.l.s4 1934713408
        %v737 = vunpack.c.0.s8 %v736
        %v738 = vperm.slane %v730, %v737
        %v739 = vrot.slane %v726, 4
        %v740 = vsel %vm390, %v739, %v720
        %v741 = vrot.slane %v720, 4
        %v742 = vsel %vm390, %v726, %v741
        %v744 = vunpack.c.l.s4 1934713408
        %v745 = vunpack.c.0.s8 %v744
        %v746 = vperm.slane %v740, %v745
        %v748 = vunpack.c.l.s4 1934713408
        %v749 = vunpack.c.0.s8 %v748
        %v750 = vperm.slane %v742, %v749
        %v751 = vrot.slane %v746, 4
        %v752 = vsel %vm390, %v751, %v734
        %v753 = vrot.slane %v734, 4
        %v754 = vsel %vm390, %v746, %v753
        %v755 = vrot.slane %v750, 4
        %v756 = vsel %vm390, %v755, %v738
        %v757 = vrot.slane %v738, 4
        %v758 = vsel %vm390, %v750, %v757
        %v759 = vpack.c.bf16 %v752, %v752
        %v760 = vpack.c.bf16 %v754, %v754
        %v761 = vpack.c.bf16 %v756, %v756
        %v762 = vpack.c.bf16 %v758, %v758
        %vm763 = vcmp.eq.f32.partialorder %v339, 0.0
        %v764 = vsel %vm763, -1e+20, 0.0
        %v766 = vperm.slane %v764, 0
        %vm768 = vcmask 64512
        %v770 = vsel %vm768, %v500, 0
        %v773 = vsel %vm768, %v633, 0
        %775 = vmatpush.bf16.xpose.msra.mxu0 0
        %776 = vmatpush.bf16.xpose.msra.mxu0 0
        %777 = vmatpush.bf16.xpose.msra.mxu0 0
        %778 = vmatpush.bf16.xpose.msra.mxu0 0
        %779 = vmatpush.bf16.xpose.msra.mxu0 0
        %780 = vmatpush.bf16.xpose.msra.mxu0 0
        %781 = vmatpush.bf16.xpose.msra.mxu0 0
        %782 = vmatpush.bf16.xpose.msra.mxu0 %v773
        %783 = vmatmul.bf16.gmra.mxu0 %v770
        %v784 = vpop.f32.mrf.mxu0
        %v785 = vadd.f32 %v766, %v784
        %v786 = vpop.f32.mrf.mxu0
        %787 = vdwg.mxu0
        %v789 = vsel %vm768, %v501, 0
        %v792 = vsel %vm768, %v634, 0
        %794 = vmatpush.bf16.xpose.msra.mxu0 0
        %795 = vmatpush.bf16.xpose.msra.mxu0 0
        %796 = vmatpush.bf16.xpose.msra.mxu0 0
        %797 = vmatpush.bf16.xpose.msra.mxu0 0
        %798 = vmatpush.bf16.xpose.msra.mxu0 0
        %799 = vmatpush.bf16.xpose.msra.mxu0 0
        %800 = vmatpush.bf16.xpose.msra.mxu0 0
        %801 = vmatpush.bf16.xpose.msra.mxu0 %v792
        %802 = vmatmul.bf16.gmra.mxu0 %v789
        %v803 = vpop.f32.mrf.mxu0
        %v804 = vadd.f32 %v766, %v803
        %v805 = vpop.f32.mrf.mxu0
        %806 = vdwg.mxu0
        %v808 = vsel %vm768, %v502, 0
        %v811 = vsel %vm768, %v635, 0
        %813 = vmatpush.bf16.xpose.msra.mxu0 0
        %814 = vmatpush.bf16.xpose.msra.mxu0 0
        %815 = vmatpush.bf16.xpose.msra.mxu0 0
        %816 = vmatpush.bf16.xpose.msra.mxu0 0
        %817 = vmatpush.bf16.xpose.msra.mxu0 0
        %818 = vmatpush.bf16.xpose.msra.mxu0 0
        %819 = vmatpush.bf16.xpose.msra.mxu0 0
        %820 = vmatpush.bf16.xpose.msra.mxu0 %v811
        %821 = vmatmul.bf16.gmra.mxu0 %v808
        %v822 = vpop.f32.mrf.mxu0
        %v823 = vadd.f32 %v766, %v822
        %v824 = vpop.f32.mrf.mxu0
        %825 = vdwg.mxu0
        %v827 = vsel %vm768, %v503, 0
        %v830 = vsel %vm768, %v636, 0
        %832 = vmatpush.bf16.xpose.msra.mxu0 0
        %833 = vmatpush.bf16.xpose.msra.mxu0 0
        %834 = vmatpush.bf16.xpose.msra.mxu0 0
        %835 = vmatpush.bf16.xpose.msra.mxu0 0
        %836 = vmatpush.bf16.xpose.msra.mxu0 0
        %837 = vmatpush.bf16.xpose.msra.mxu0 0
        %838 = vmatpush.bf16.xpose.msra.mxu0 0
        %839 = vmatpush.bf16.xpose.msra.mxu0 %v830
        %840 = vmatmul.bf16.gmra.mxu0 %v827
        %v841 = vpop.f32.mrf.mxu0
        %v842 = vadd.f32 %v766, %v841
        %v843 = vpop.f32.mrf.mxu0
        %844 = vdwg.mxu0
        %v845 = vsel %vm768, %v785, -inf
        %846 = vmax.xlane.f32.xlu0 %v845
        %v847 = vpop.xlane.xlu0 %846
        %v848 = vsel %vm768, %v804, -inf
        %849 = vmax.xlane.f32.xlu0 %v848
        %v850 = vpop.xlane.xlu0 %849
        %v851 = vsel %vm768, %v823, -inf
        %852 = vmax.xlane.f32.xlu0 %v851
        %v853 = vpop.xlane.xlu0 %852
        %v854 = vsel %vm768, %v842, -inf
        %855 = vmax.xlane.f32.xlu0 %v854
        %v856 = vpop.xlane.xlu0 %855
        %v857 = vsub.f32 %v785, %v847
        %v858 = vsub.f32 %v804, %v850
        %v859 = vsub.f32 %v823, %v853
        %v860 = vsub.f32 %v842, %v856
        %v861 = vmul.f32 %v857, 1.442695
        %v862 = vpow.pop %v861
        %v863 = vmul.f32 %v858, 1.442695
        %v864 = vpow.pop %v863
        %v865 = vmul.f32 %v859, 1.442695
        %v866 = vpow.pop %v865
        %v867 = vmul.f32 %v860, 1.442695
        %v868 = vpow.pop %v867
        %v869 = vsel %vm768, %v862, 0.0
        %870 = vadd.xlane.f32.xlu0 %v869
        %v871 = vpop.xlane.xlu0 %870
        %v872 = vsel %vm768, %v864, 0.0
        %873 = vadd.xlane.f32.xlu0 %v872
        %v874 = vpop.xlane.xlu0 %873
        %v875 = vsel %vm768, %v866, 0.0
        %876 = vadd.xlane.f32.xlu0 %v875
        %v877 = vpop.xlane.xlu0 %876
        %v878 = vsel %vm768, %v868, 0.0
        %879 = vadd.xlane.f32.xlu0 %v878
        %v880 = vpop.xlane.xlu0 %879
        %v881 = vrcp.pop %v871
        %v882 = vrcp.pop %v874
        %v883 = vrcp.pop %v877
        %v884 = vrcp.pop %v880
        %v885 = vmul.f32 %v862, %v881
        %v886 = vmul.f32 %v864, %v882
        %v887 = vmul.f32 %v866, %v883
        %v888 = vmul.f32 %v868, %v884
        %v889 = vpack.c.bf16 %v885, %v885
        %v890 = vpack.c.bf16 %v886, %v886
        %v891 = vpack.c.bf16 %v887, %v887
        %v892 = vpack.c.bf16 %v888, %v888
        %v894 = vsel %vm768, %v889, 0
        %vm896 = vcmask 1043456
        %v898 = vsel %vm896, %v759, 0
        %900 = vmatpush.bf16.msra.mxu0 0
        %901 = vmatpush.bf16.msra.mxu0 0
        %902 = vmatpush.bf16.msra.mxu0 0
        %903 = vmatpush.bf16.msra.mxu0 0
        %904 = vmatpush.bf16.msra.mxu0 0
        %905 = vmatpush.bf16.msra.mxu0 0
        %906 = vmatpush.bf16.msra.mxu0 0
        %907 = vmatpush.bf16.msra.mxu0 %v898
        %908 = vmatmul.bf16.gmra.mxu0 %v894
        %v909 = vpop.f32.mrf.mxu0
        %v910 = vadd.f32 0.0, %v909
        %v911 = vpop.f32.mrf.mxu0
        %912 = vdwg.mxu0
        %v914 = vsel %vm768, %v890, 0
        %v917 = vsel %vm896, %v760, 0
        %919 = vmatpush.bf16.msra.mxu0 0
        %920 = vmatpush.bf16.msra.mxu0 0
        %921 = vmatpush.bf16.msra.mxu0 0
        %922 = vmatpush.bf16.msra.mxu0 0
        %923 = vmatpush.bf16.msra.mxu0 0
        %924 = vmatpush.bf16.msra.mxu0 0
        %925 = vmatpush.bf16.msra.mxu0 0
        %926 = vmatpush.bf16.msra.mxu0 %v917
        %927 = vmatmul.bf16.gmra.mxu0 %v914
        %v928 = vpop.f32.mrf.mxu0
        %v929 = vadd.f32 0.0, %v928
        %v930 = vpop.f32.mrf.mxu0
        %931 = vdwg.mxu0
        %v933 = vsel %vm768, %v891, 0
        %v936 = vsel %vm896, %v761, 0
        %938 = vmatpush.bf16.msra.mxu0 0
        %939 = vmatpush.bf16.msra.mxu0 0
        %940 = vmatpush.bf16.msra.mxu0 0
        %941 = vmatpush.bf16.msra.mxu0 0
        %942 = vmatpush.bf16.msra.mxu0 0
        %943 = vmatpush.bf16.msra.mxu0 0
        %944 = vmatpush.bf16.msra.mxu0 0
        %945 = vmatpush.bf16.msra.mxu0 %v936
        %946 = vmatmul.bf16.gmra.mxu0 %v933
        %v947 = vpop.f32.mrf.mxu0
        %v948 = vadd.f32 0.0, %v947
        %v949 = vpop.f32.mrf.mxu0
        %950 = vdwg.mxu0
        %v952 = vsel %vm768, %v892, 0
        %v955 = vsel %vm896, %v762, 0
        %957 = vmatpush.bf16.msra.mxu0 0
        %958 = vmatpush.bf16.msra.mxu0 0
        %959 = vmatpush.bf16.msra.mxu0 0
        %960 = vmatpush.bf16.msra.mxu0 0
        %961 = vmatpush.bf16.msra.mxu0 0
        %962 = vmatpush.bf16.msra.mxu0 0
        %963 = vmatpush.bf16.msra.mxu0 0
        %964 = vmatpush.bf16.msra.mxu0 %v955
        %965 = vmatmul.bf16.gmra.mxu0 %v952
        %v966 = vpop.f32.mrf.mxu0
        %v967 = vadd.f32 0.0, %v966
        %v968 = vpop.f32.mrf.mxu0
        %969 = vdwg.mxu0
        %v970 = vrot.slane %v948, 4
        %v971 = vsel %vm390, %v970, %v910
        %v972 = vrot.slane %v910, 4
        %v973 = vsel %vm390, %v948, %v972
        %v975 = vunpack.c.l.s4 1983009808
        %v976 = vunpack.c.0.s8 %v975
        %v977 = vperm.slane %v971, %v976
        %v979 = vunpack.c.l.s4 1983009808
        %v980 = vunpack.c.0.s8 %v979
        %v981 = vperm.slane %v973, %v980
        %v982 = vrot.slane %v967, 4
        %v983 = vsel %vm390, %v982, %v929
        %v984 = vrot.slane %v929, 4
        %v985 = vsel %vm390, %v967, %v984
        %v987 = vunpack.c.l.s4 1983009808
        %v988 = vunpack.c.0.s8 %v987
        %v989 = vperm.slane %v983, %v988
        %v991 = vunpack.c.l.s4 1983009808
        %v992 = vunpack.c.0.s8 %v991
        %v993 = vperm.slane %v985, %v992
        %v994 = vrot.slane %v989, 4
        %v995 = vsel %vm390, %v994, %v977
        %v996 = vrot.slane %v977, 4
        %v997 = vsel %vm390, %v989, %v996
        %v999 = vunpack.c.l.s4 1934713408
        %v1000 = vunpack.c.0.s8 %v999
        %v1001 = vperm.slane %v995, %v1000
        %v1003 = vunpack.c.l.s4 1934713408
        %v1004 = vunpack.c.0.s8 %v1003
        %v1005 = vperm.slane %v997, %v1004
        %v1006 = vrot.slane %v993, 4
        %v1007 = vsel %vm390, %v1006, %v981
        %v1008 = vrot.slane %v981, 4
        %v1009 = vsel %vm390, %v993, %v1008
        %v1011 = vunpack.c.l.s4 1934713408
        %v1012 = vunpack.c.0.s8 %v1011
        %v1013 = vperm.slane %v1007, %v1012
        %v1015 = vunpack.c.l.s4 1934713408
        %v1016 = vunpack.c.0.s8 %v1015
        %v1017 = vperm.slane %v1009, %v1016
        %v1018 = vrot.slane %v1001, 4
        %v1019 = vsel %vm390, 0.0, %v1018
        %v1020 = vrot.slane %v1005, 4
        %v1021 = vsel %vm390, 0.0, %v1020
        %v1022 = vrot.slane %v1013, 4
        %v1023 = vsel %vm390, 0.0, %v1022
        %v1024 = vrot.slane %v1017, 4
        %v1025 = vsel %vm390, 0.0, %v1024
        %v1026 = vsel %vm390, %v1020, %v1001
        %v1028 = vunpack.c.l.s4 1983009808
        %v1029 = vunpack.c.0.s8 %v1028
        %v1030 = vperm.slane %v1026, %v1029
        %v1031 = vrot.slane %v1021, 4
        %v1032 = vsel %vm390, %v1031, %v1019
        %v1034 = vunpack.c.l.s4 1983009808
        %v1035 = vunpack.c.0.s8 %v1034
        %v1036 = vperm.slane %v1032, %v1035
        %v1037 = vsel %vm390, %v1024, %v1013
        %v1039 = vunpack.c.l.s4 1983009808
        %v1040 = vunpack.c.0.s8 %v1039
        %v1041 = vperm.slane %v1037, %v1040
        %v1042 = vrot.slane %v1025, 4
        %v1043 = vsel %vm390, %v1042, %v1023
        %v1045 = vunpack.c.l.s4 1983009808
        %v1046 = vunpack.c.0.s8 %v1045
        %v1047 = vperm.slane %v1043, %v1046
        %v1048 = vrot.slane %v1036, 4
        %v1049 = vsel %vm390, %v1048, %v1030
        %v1050 = vrot.slane %v1030, 4
        %v1051 = vsel %vm390, %v1036, %v1050
        %v1053 = vunpack.c.l.s4 1934713408
        %v1054 = vunpack.c.0.s8 %v1053
        %v1055 = vperm.slane %v1049, %v1054
        %v1057 = vunpack.c.l.s4 1934713408
        %v1058 = vunpack.c.0.s8 %v1057
        %v1059 = vperm.slane %v1051, %v1058
        %v1060 = vrot.slane %v1047, 4
        %v1061 = vsel %vm390, %v1060, %v1041
        %v1062 = vrot.slane %v1041, 4
        %v1063 = vsel %vm390, %v1047, %v1062
        %v1065 = vunpack.c.l.s4 1934713408
        %v1066 = vunpack.c.0.s8 %v1065
        %v1067 = vperm.slane %v1061, %v1066
        %v1069 = vunpack.c.l.s4 1934713408
        %v1070 = vunpack.c.0.s8 %v1069
        %v1071 = vperm.slane %v1063, %v1070
        %v1072 = vrot.slane %v1067, 4
        %v1073 = vsel %vm390, %v1072, %v1055
        %v1074 = vrot.slane %v1055, 4
        %v1075 = vsel %vm390, %v1067, %v1074
        %v1076 = vrot.slane %v1071, 4
        %v1077 = vsel %vm390, %v1076, %v1059
        %v1078 = vrot.slane %v1059, 4
        %v1079 = vsel %vm390, %v1071, %v1078
        %1081 = vrot.lane.b32.xlu0 %v1075, 8
        %v1082 = vpop.permute.xlu0 %1081
        %1085 = vrot.lane.b32.xlu0 %v1077, 16
        %v1086 = vpop.permute.xlu0 %1085
        %1089 = vrot.lane.b32.xlu0 %v1079, 24
        %v1090 = vpop.permute.xlu0 %1089
        %v1092 = vsel %vm768, %v1073, %v1082
        %vm1093 = vcmask 130048
        %v1094 = vsel %vm1093, %v1092, %v1086
        %vm1095 = vcmask 195584
        %v1096 = vsel %vm1095, %v1094, %v1090
        %v1097 = vpack.c.bf16 %v1096, %v1096
        %v1098 = vld [vmem:[#allocation8] sm:$0xf]
        %v1099 = vld [vmem:[#allocation8 + $0x4] sm:$0xf]
        %v1100 = vld [vmem:[#allocation8 + $0x8] sm:$0xf]
        %v1101 = vld [vmem:[#allocation8 + $0xc] sm:$0xf]
        %v1102 = vld [vmem:[%s5] sm:$0x1]
        %v1104 = vperm.slane %v1102, 0
        %v1110 = vunpack.c.l.b16 %v1098
        %v1111 = vunpack.c.l.b16 %v1099
        %v1112 = vunpack.c.l.b16 %v1100
        %v1113 = vunpack.c.l.b16 %v1101
        %v1114 = vpack.c.b16 %v1111, %v1110
        %v1115 = vpack.c.b16 %v1113, %v1112
        %v1119 = vsel %vm361, %v1097, 0
        %1121 = vmatpush.bf16.msra.mxu0 0
        %1122 = vmatpush.bf16.msra.mxu0 0
        %1123 = vmatpush.bf16.msra.mxu0 0
        %1124 = vmatpush.bf16.msra.mxu0 0
        %1125 = vmatpush.bf16.msra.mxu0 0
        %1126 = vmatpush.bf16.msra.mxu0 0
        %1127 = vmatpush.bf16.msra.mxu0 %v1115
        %1128 = vmatpush.bf16.msra.mxu0 %v1114
        %1129 = vmatmul.bf16.gmra.mxu0 %v1119
        %v1130 = vpop.f32.mrf.mxu0
        %v1131 = vadd.f32 %v1104, %v1130
        %v1132 = vpop.f32.mrf.mxu0
        %1133 = vdwg.mxu0
        %1134 = vst.msk [vmem:[%s336] sm:$0xff] %vm361, %v1131
        %s1135 = sand.u32 %s171, 1
        %s1136 = scalar_lea.sflag [#allocation4], %s1135
        %s1137 = sand.u32 %s171, 1
        %s1138 = smul.addr %s1137, 8
        %s1139 = scalar_lea.vmem [#allocation10], %s1138
        // Predicated region
        $region61: #{tpu_custom_call.1} parent=43 // pred_check
          %p1140 = pneg %p181
        $region62: #{tpu_custom_call.1} parent=43 // pred_check_branch
          %1142 = sbr.rel (%p1140) target = $region64
        $region63: #{tpu_custom_call.1} parent=43 // pred_region
          %1144 = vsyncadd %s1136, 0
          %s1145 = smul.addr %s27, 8
          %s1146 = scalar_lea.hbm %s6, %s1145
          %s1148 = sshll.u32 %s1139, 4
          %s1149 = int_to_ptr.vmem [resolvable:$true] %s1148
          %s1150 = sshll.u32 %s1146, 4
          %s1151 = int_to_ptr.hbm [resolvable:$true] %s1150
          %1153 = dma.vmem_to_hbm [thread:$0]  %s1149, 128, %s1151, %s1136
        $region64: #{tpu_custom_call.1} parent=43 // pred_fallthru
          _
      $region44: #{tpu_custom_call.1} parent=5 // pred_fallthru
        _
      %p1154 = scmp.le.s32.totalorder 2, %s22
      // Predicated region
      $region65: #{tpu_custom_call.1} parent=5 // pred_check
        %p1155 = pneg %p1154
      $region66: #{tpu_custom_call.1} parent=5 // pred_check_branch
        %1157 = sbr.rel (%p1155) target = $region68
      $region67: #{tpu_custom_call.1} parent=5 // pred_region
        %s1158 = ssub.s32 %s22, 2
        // Predicated region
        $region69: #{tpu_custom_call.1} parent=67 // pred_check
          %p1159 = pneg %p187
        $region70: #{tpu_custom_call.1} parent=67 // pred_check_branch
          %1161 = sbr.rel (%p1159) target = $region72
        $region71: #{tpu_custom_call.1} parent=67 // pred_region
          %s1162 = sand.u32 %s172, 1
          %s1163 = scalar_lea.sflag [#allocation4], %s1162
          %s1164 = sand.u32 %s172, 1
          %s1165 = smul.addr %s1164, 8
          %s1166 = scalar_lea.vmem [#allocation10], %s1165
          %1168 = dma.done %s1163, 128
        $region72: #{tpu_custom_call.1} parent=67 // pred_fallthru
          _
      $region68: #{tpu_custom_call.1} parent=5 // pred_fallthru
        _
    $region6: #{tpu_custom_call.1} parent=1 // loop_footer
      %s26 = sadd.s32 1, %s22
    $region7: #{tpu_custom_call.1} parent=1 // loop_footer_branch
      %21 = sbr.rel target = $region3
    $region8: #{tpu_custom_call.1} parent=1 // loop_exit
      _
    %1169 = vsyncpa [#allocation3], 1
    %s1170 = scalar_lea.sflag [#allocation3], 1
    %1171 = vsyncpa %s1170, 1
    %1172 = vsyncpa [#allocation6], 1
    %s1173 = scalar_lea.sflag [#allocation6], 1
    %1174 = vsyncpa %s1173, 1
    %1175 = vsyncpa [#allocation9], 1
    %1176 = vsyncpa [#allocation4], 1
    %s1177 = scalar_lea.sflag [#allocation4], 1
    %1178 = vsyncpa %s1177, 1

</llo_original>
